<compile_context>
chip_gen: v5e
topology: v5e:2x2
jax: 0.10.0
libtpu: 0.0.40
codegen_flags: <defaults>
</compile_context>

<pallas_src>
import functools

import jax
import jax.numpy as jnp
from jax import lax
from jax.experimental import pallas as pl
from jax.experimental.pallas import tpu as pltpu


def actor_kernel(x_ref, w1_ref, b1_ref, w2_ref, b2_ref, w3_ref, b3_ref, o_ref,
                 *, n_sub, two_class):
    # Lane-dense transposed orientation: x_ref is [state_dim, tile_b], o_ref is
    # [action_dim, tile_b]; the batch lives on the 128-wide lane axis.
    tile_b = x_ref.shape[1]
    sub = tile_b // n_sub

    # Weights are VMEM-resident (constant index_map); load once per grid step.
    w1 = w1_ref[...]
    w2 = w2_ref[...]
    w3 = w3_ref[...]

    # Hoisted bias broadcasts: JAX does not CSE broadcast_in_dim, so materialize them
    # once instead of once per sub-chunk.
    b1b = jnp.broadcast_to(b1_ref[...], (w1.shape[0], sub))
    b2b = jnp.broadcast_to(b2_ref[...], (w2.shape[0], sub))
    b3b = jnp.broadcast_to(b3_ref[...], (w3.shape[0], sub))

    def process(xs):
        # fc1 + ReLU, fc2 + ReLU (MXU matmuls, f32 accumulation).
        h1 = jnp.maximum(jnp.dot(w1, xs, preferred_element_type=jnp.float32) + b1b, 0.0)
        h2 = jnp.maximum(jnp.dot(w2, h1, preferred_element_type=jnp.float32) + b2b, 0.0)
        logits = jnp.dot(w3, h2, preferred_element_type=jnp.float32) + b3b
        if two_class:
            # softmax over 2 classes == sigmoid(logit0 - logit1): drops the cross-
            # sublane max/sum and one exp from the per-chunk epilogue. Exact
            # reciprocal keeps 1e-5 parity with the f32 reference.
            d = logits[0:1, :] - logits[1:2, :]
            p0 = pl.reciprocal(1.0 + jnp.exp(-d), approx=False)
            return jnp.concatenate([p0, 1.0 - p0], axis=0)
        # General numerically-stable softmax over the feature (sublane) axis.
        m = jnp.max(logits, axis=0, keepdims=True)
        e = jnp.exp(logits - m)
        return e * pl.reciprocal(jnp.sum(e, axis=0, keepdims=True), approx=False)

    if n_sub == 1:
        o_ref[...] = process(x_ref[...]).astype(o_ref.dtype)
    else:
        # Fully-unrolled fori_loop bounds per-chunk live ranges so n_sub can scale with
        # tile_b without pushing h1/h2 past the 64-vreg budget.
        def body(c, carry):
            col = pl.multiple_of(c * sub, 128)
            probs = process(x_ref[:, pl.ds(col, sub)])
            o_ref[:, pl.ds(col, sub)] = probs.astype(o_ref.dtype)
            return carry

        lax.fori_loop(0, n_sub, body, 0, unroll=True)


def actor_ref(x, params):
    """Pure-JAX reference matching the PyTorch forward."""
    w1, b1, w2, b2, w3, b3 = params
    h1 = jnp.maximum(x @ w1.T + b1[:, 0], 0.0)
    h2 = jnp.maximum(h1 @ w2.T + b2[:, 0], 0.0)
    return jax.nn.softmax(h2 @ w3.T + b3[:, 0], axis=-1)


def actor_forward(x, params, *, tile_b=2048, min_pallas_batch=256):
    """softmax(relu(relu(x W1^T + b1) W2^T + b2) W3^T + b3).

    x: [B, state_dim]; weights in PyTorch layout [out, in]; biases [out, 1].
    Returns [B, action_dim] probabilities (f32).
    """
    w1, b1, w2, b2, w3, b3 = params
    B, state_dim = x.shape
    action_dim = w3.shape[0]

    # Tiny (action-selection) batches: the wrapper transpose/pad/slice dispatches plus
    # one 600-cycle grid step dominate wall time -> plain XLA is faster there.
    if B < min_pallas_batch:
        return actor_ref(x, params)

    def round_down_128(n):
        return max(128, (n // 128) * 128)

    padded128 = pl.cdiv(B, 128) * 128
    tb = round_down_128(min(int(tile_b), padded128))
    # Guarantee >= 2 grid steps whenever there is enough work so "parallel" semantics
    # can shard batch tiles across both TensorCores on v7x (no-op on v5e/v6e).
    if padded128 >= 256:
        tb = min(tb, round_down_128(padded128 // 2))
    padded_b = pl.cdiv(padded128, tb) * tb

    # Fixed sub-chunk width (128/256 lanes); n_sub scales with tile_b so larger tiles
    # amortize per-step overhead without growing per-chunk vreg footprint.
    sub = 256 if tb % 256 == 0 else 128
    n_sub = tb // sub

    # Lane-dense layout: put the batch on the last (lane) axis -> full-width stores.
    xt = jnp.transpose(x)  # [state_dim, B]
    if padded_b != B:
        xt = jnp.pad(xt, ((0, 0), (0, padded_b - B)))

    # Weights/biases: full blocks with constant index_maps -> VMEM-resident (~35 KB f32),
    # not re-fetched per grid step. x/out tiles are double-buffered by BlockSpec.
    def resident(arr):
        return pl.BlockSpec(arr.shape, lambda i, nd=arr.ndim: (0,) * nd)

    out_t = pl.pallas_call(
        functools.partial(actor_kernel, n_sub=n_sub, two_class=(action_dim == 2)),
        out_shape=jax.ShapeDtypeStruct((action_dim, padded_b), jnp.float32),
        grid=(padded_b // tb,),
        in_specs=[
            pl.BlockSpec((state_dim, tb), lambda i: (0, i)),
            resident(w1), resident(b1),
            resident(w2), resident(b2),
            resident(w3), resident(b3),
        ],
        out_specs=pl.BlockSpec((action_dim, tb), lambda i: (0, i)),
        compiler_params=pltpu.CompilerParams(
            dimension_semantics=("parallel",),
        ),
    )(xt, w1, b1, w2, b2, w3, b3)

    return jnp.transpose(out_t[:, :B])


def init_params(key, state_dim, hidden, action_dim):
    """Deterministic init mimicking PyTorch nn.Linear default U[-1/sqrt(fan_in), +]."""
    ks = jax.random.split(key, 6)

    def lin(kw, kb, fan_in, fan_out):
        bound = 1.0 / jnp.sqrt(jnp.float32(fan_in))
        w = jax.random.uniform(kw, (fan_out, fan_in), jnp.float32, -bound, bound)  # [out, in]
        b = jax.random.uniform(kb, (fan_out, 1), jnp.float32, -bound, bound)       # [out, 1]
        return w, b

    w1, b1 = lin(ks[0], ks[1], state_dim, hidden)
    w2, b2 = lin(ks[2], ks[3], hidden, hidden)
    w3, b3 = lin(ks[4], ks[5], hidden, action_dim)
    return (w1, b1, w2, b2, w3, b3)


if __name__ == "__main__":
    # CartPole-v1: state_dim = 4, action_dim = 2
    STATE_DIM, HIDDEN, ACTION_DIM = 4, 64, 2

    key = jax.random.PRNGKey(0)
    k_params, k_small, k_mid, k_large = jax.random.split(key, 4)
    params = init_params(k_params, STATE_DIM, HIDDEN, ACTION_DIM)

    # Small action-selection batch, forced through the Pallas kernel (single 128-lane tile).
    x_small = jax.random.normal(k_small, (8, STATE_DIM), jnp.float32)
    probs_small = actor_forward(x_small, params, min_pallas_batch=0)
    jax.block_until_ready(probs_small)
    ref_small = actor_ref(x_small, params)
    assert probs_small.shape == (8, ACTION_DIM)
    assert jnp.allclose(probs_small, ref_small, atol=1e-5, rtol=1e-5)
    assert jnp.allclose(jnp.sum(probs_small, axis=-1), 1.0, atol=1e-5)

    # Default small-batch path (plain-XLA fallback) must agree as well.
    x_mid = jax.random.normal(k_mid, (64, STATE_DIM), jnp.float32)
    probs_mid = actor_forward(x_mid, params)
    jax.block_until_ready(probs_mid)
    assert jnp.allclose(probs_mid, actor_ref(x_mid, params), atol=1e-5, rtol=1e-5)

    # Rollout-sized batch: exercises >=2 parallel grid steps, fori_loop sub-chunks,
    # and the padded tail columns.
    x_large = jax.random.normal(k_large, (1000, STATE_DIM), jnp.float32)
    probs_large = actor_forward(x_large, params)
    jax.block_until_ready(probs_large)
    ref_large = actor_ref(x_large, params)
    assert probs_large.shape == (1000, ACTION_DIM)
    assert jnp.allclose(probs_large, ref_large, atol=1e-5, rtol=1e-5)
    assert jnp.allclose(jnp.sum(probs_large, axis=-1), 1.0, atol=1e-5)

    print("KERNEL_OK")
</pallas_src>

<mosaic_0001>
module attributes {stable_mosaic.version = 11 : i64} {
  func.func @actor_kernel(%arg0: i32, %arg1: memref<4x128xf32, #tpu.memory_space<vmem>>, %arg2: memref<64x4xf32, #tpu.memory_space<vmem>>, %arg3: memref<64x1xf32, #tpu.memory_space<vmem>>, %arg4: memref<64x64xf32, #tpu.memory_space<vmem>>, %arg5: memref<64x1xf32, #tpu.memory_space<vmem>>, %arg6: memref<2x64xf32, #tpu.memory_space<vmem>>, %arg7: memref<2x1xf32, #tpu.memory_space<vmem>>, %arg8: memref<2x128xf32, #tpu.memory_space<vmem>>) attributes {dimension_semantics = [#tpu.dimension_semantics<parallel>], iteration_bounds = array<i64: 1>, scalar_prefetch = 0 : i64, scratch_operands = 0 : i64, tpu.core_type = #tpu.core_type<tc>, window_params = [{transform_indices = @transform_0, window_bounds = array<i64: 4, 128>}, {pipeline_mode = #tpu.pipeline_mode<synchronous>, transform_indices = @transform_1, window_bounds = array<i64: 64, 4>}, {pipeline_mode = #tpu.pipeline_mode<synchronous>, transform_indices = @transform_2, window_bounds = array<i64: 64, 1>}, {pipeline_mode = #tpu.pipeline_mode<synchronous>, transform_indices = @transform_3, window_bounds = array<i64: 64, 64>}, {pipeline_mode = #tpu.pipeline_mode<synchronous>, transform_indices = @transform_4, window_bounds = array<i64: 64, 1>}, {pipeline_mode = #tpu.pipeline_mode<synchronous>, transform_indices = @transform_5, window_bounds = array<i64: 2, 64>}, {pipeline_mode = #tpu.pipeline_mode<synchronous>, transform_indices = @transform_6, window_bounds = array<i64: 2, 1>}, {transform_indices = @transform_7, window_bounds = array<i64: 2, 128>}]} {
    %c0 = arith.constant 0 : index
    %c0_0 = arith.constant 0 : index
    %0 = vector.load %arg2[%c0, %c0_0] : memref<64x4xf32, #tpu.memory_space<vmem>>, vector<64x4xf32>
    %c0_1 = arith.constant 0 : index
    %c0_2 = arith.constant 0 : index
    %1 = vector.load %arg4[%c0_1, %c0_2] : memref<64x64xf32, #tpu.memory_space<vmem>>, vector<64x64xf32>
    %c0_3 = arith.constant 0 : index
    %c0_4 = arith.constant 0 : index
    %2 = vector.load %arg6[%c0_3, %c0_4] : memref<2x64xf32, #tpu.memory_space<vmem>>, vector<2x64xf32>
    %c0_5 = arith.constant 0 : index
    %c0_6 = arith.constant 0 : index
    %3 = vector.load %arg3[%c0_5, %c0_6] : memref<64x1xf32, #tpu.memory_space<vmem>>, vector<64x1xf32>
    %4 = vector.shape_cast %3 : vector<64x1xf32> to vector<64x1xf32>
    %5 = vector.broadcast %4 : vector<64x1xf32> to vector<64x128xf32>
    %c0_7 = arith.constant 0 : index
    %c0_8 = arith.constant 0 : index
    %6 = vector.load %arg5[%c0_7, %c0_8] : memref<64x1xf32, #tpu.memory_space<vmem>>, vector<64x1xf32>
    %7 = vector.shape_cast %6 : vector<64x1xf32> to vector<64x1xf32>
    %8 = vector.broadcast %7 : vector<64x1xf32> to vector<64x128xf32>
    %c0_9 = arith.constant 0 : index
    %c0_10 = arith.constant 0 : index
    %9 = vector.load %arg7[%c0_9, %c0_10] : memref<2x1xf32, #tpu.memory_space<vmem>>, vector<2x1xf32>
    %10 = vector.shape_cast %9 : vector<2x1xf32> to vector<2x1xf32>
    %11 = vector.broadcast %10 : vector<2x1xf32> to vector<2x128xf32>
    %c0_11 = arith.constant 0 : index
    %c0_12 = arith.constant 0 : index
    %12 = vector.load %arg1[%c0_11, %c0_12] : memref<4x128xf32, #tpu.memory_space<vmem>>, vector<4x128xf32>
    %cst = arith.constant dense<0.000000e+00> : vector<64x128xf32>
    %13 = tpu.matmul %0, %12, %cst {dimension_numbers = #tpu.dot_dimension_numbers<[1], [0], [0], [1], [0, 0, 1, 1], [], []>} : vector<64x4xf32>, vector<4x128xf32>, vector<64x128xf32> -> vector<64x128xf32>
    %14 = arith.addf %13, %5 : vector<64x128xf32>
    %cst_13 = arith.constant 0.000000e+00 : f32
    %15 = vector.broadcast %cst_13 : f32 to vector<64x128xf32>
    %16 = arith.maximumf %14, %15 : vector<64x128xf32>
    %cst_14 = arith.constant dense<0.000000e+00> : vector<64x128xf32>
    %17 = tpu.matmul %1, %16, %cst_14 {dimension_numbers = #tpu.dot_dimension_numbers<[1], [0], [0], [1], [0, 0, 1, 1], [], []>} : vector<64x64xf32>, vector<64x128xf32>, vector<64x128xf32> -> vector<64x128xf32>
    %18 = arith.addf %17, %8 : vector<64x128xf32>
    %cst_15 = arith.constant 0.000000e+00 : f32
    %19 = vector.broadcast %cst_15 : f32 to vector<64x128xf32>
    %20 = arith.maximumf %18, %19 : vector<64x128xf32>
    %cst_16 = arith.constant dense<0.000000e+00> : vector<2x128xf32>
    %21 = tpu.matmul %2, %20, %cst_16 {dimension_numbers = #tpu.dot_dimension_numbers<[1], [0], [0], [1], [0, 0, 1, 1], [], []>} : vector<2x64xf32>, vector<64x128xf32>, vector<2x128xf32> -> vector<2x128xf32>
    %22 = arith.addf %21, %11 : vector<2x128xf32>
    %23 = vector.extract_strided_slice %22 {offsets = [0, 0], sizes = [1, 128], strides = [1, 1]} : vector<2x128xf32> to vector<1x128xf32>
    %24 = vector.extract_strided_slice %22 {offsets = [1, 0], sizes = [1, 128], strides = [1, 1]} : vector<2x128xf32> to vector<1x128xf32>
    %25 = arith.subf %23, %24 : vector<1x128xf32>
    %cst_17 = arith.constant 0.000000e+00 : f32
    %26 = vector.broadcast %cst_17 : f32 to vector<1x128xf32>
    %27 = arith.subf %26, %25 : vector<1x128xf32>
    %28 = math.exp %27 : vector<1x128xf32>
    %cst_18 = arith.constant 1.000000e+00 : f32
    %29 = vector.broadcast %cst_18 : f32 to vector<1x128xf32>
    %30 = arith.addf %29, %28 : vector<1x128xf32>
    %31 = tpu.reciprocal %30 : vector<1x128xf32> -> vector<1x128xf32>
    %cst_19 = arith.constant 1.000000e+00 : f32
    %32 = vector.broadcast %cst_19 : f32 to vector<1x128xf32>
    %33 = arith.subf %32, %31 : vector<1x128xf32>
    %34 = tpu.concatenate %31, %33 in 0 : vector<1x128xf32>, vector<1x128xf32> -> vector<2x128xf32>
    %c0_20 = arith.constant 0 : index
    %c0_21 = arith.constant 0 : index
    %35 = vector.load %arg8[%c0_20, %c0_21] : memref<2x128xf32, #tpu.memory_space<vmem>>, vector<2x128xf32>
    tpu.vector_store %arg8[%c0_20, %c0_21], %34 {strides = array<i32>} : memref<2x128xf32, #tpu.memory_space<vmem>>, vector<2x128xf32>,
    return
  }
  func.func @transform_0(%arg0: i32) -> (i32, i32) {
    %c0_i32 = arith.constant 0 : i32
    %c0_i32_0 = arith.constant 0 : i32
    return %c0_i32, %arg0 : i32, i32
  }
  func.func @transform_1(%arg0: i32) -> (i32, i32) {
    %c0_i32 = arith.constant 0 : i32
    %c0_i32_0 = arith.constant 0 : i32
    %c0_i32_1 = arith.constant 0 : i32
    return %c0_i32, %c0_i32_0 : i32, i32
  }
  func.func @transform_2(%arg0: i32) -> (i32, i32) {
    %c0_i32 = arith.constant 0 : i32
    %c0_i32_0 = arith.constant 0 : i32
    %c0_i32_1 = arith.constant 0 : i32
    return %c0_i32, %c0_i32_0 : i32, i32
  }
  func.func @transform_3(%arg0: i32) -> (i32, i32) {
    %c0_i32 = arith.constant 0 : i32
    %c0_i32_0 = arith.constant 0 : i32
    %c0_i32_1 = arith.constant 0 : i32
    return %c0_i32, %c0_i32_0 : i32, i32
  }
  func.func @transform_4(%arg0: i32) -> (i32, i32) {
    %c0_i32 = arith.constant 0 : i32
    %c0_i32_0 = arith.constant 0 : i32
    %c0_i32_1 = arith.constant 0 : i32
    return %c0_i32, %c0_i32_0 : i32, i32
  }
  func.func @transform_5(%arg0: i32) -> (i32, i32) {
    %c0_i32 = arith.constant 0 : i32
    %c0_i32_0 = arith.constant 0 : i32
    %c0_i32_1 = arith.constant 0 : i32
    return %c0_i32, %c0_i32_0 : i32, i32
  }
  func.func @transform_6(%arg0: i32) -> (i32, i32) {
    %c0_i32 = arith.constant 0 : i32
    %c0_i32_0 = arith.constant 0 : i32
    %c0_i32_1 = arith.constant 0 : i32
    return %c0_i32, %c0_i32_0 : i32, i32
  }
  func.func @transform_7(%arg0: i32) -> (i32, i32) {
    %c0_i32 = arith.constant 0 : i32
    %c0_i32_0 = arith.constant 0 : i32
    return %c0_i32, %arg0 : i32, i32
  }
}

</mosaic_0001>

<llo_original>
// kernel: tpu_custom_call.1
$region0: #{tpu_custom_call.1}
  #allocation0 [shape = 'u32[]', space=smem, size = 0x4, offset = 0x4, fixed_abs, tag = 'smem constant byte address 0x4 - core index']
  #allocation1 [shape = 'u32[72,128]{1,0:T(1,128)}', space=vmem, size = 0x9000, scoped, tag = 'internal scratch']
  %s0 = inlined_call_operand.vmem [shape: f32[4,128], index: 0, kind: input, shape index: {}]
  %s1 = inlined_call_operand.vmem [shape: f32[64,4], index: 1, kind: input, shape index: {}]
  %s2 = inlined_call_operand.vmem [shape: f32[64,1], index: 2, kind: input, shape index: {}]
  %s3 = inlined_call_operand.vmem [shape: f32[64,64], index: 3, kind: input, shape index: {}]
  %s4 = inlined_call_operand.vmem [shape: f32[64,1], index: 4, kind: input, shape index: {}]
  %s5 = inlined_call_operand.vmem [shape: f32[2,64], index: 5, kind: input, shape index: {}]
  %s6 = inlined_call_operand.vmem [shape: f32[2,1], index: 6, kind: input, shape index: {}]
  %s7 = inlined_call_operand.hbm [shape: f32[2,128], index: 7, kind: output, shape index: {}]
  %s8 = sld [smem:[#allocation0]]
  $region38: #{tpu_custom_call.1} parent=0
    _
  %s10 = ssub.s32 1, %s8
  %s11 = scalar_select 0, %s10, %s8
  $region1: #{tpu_custom_call.1} parent=0
    #allocation2 [shape = 'u8[1024]{0}', space=vmem, size = 0x400, scoped, tag = 'output window, operand 0, single buffered']
    #allocation3 [shape = 's32[1]{0}', space=sflag, size = 0x4, scoped, tag = 'scoped memory for tpu_custom_call.1']
    %12 = vsyncpa [#allocation3], 0
    // Predicated region
    $region2: #{tpu_custom_call.1} parent=1 // pred_check
      _
    $region3: #{tpu_custom_call.1} parent=1 // pred_check_branch
      %14 = sbr.rel (0) target = $region5
    $region4: #{tpu_custom_call.1} parent=1 // pred_region
      _
    $region5: #{tpu_custom_call.1} parent=1 // pred_fallthru
      _
    // Predicated region
    $region6: #{tpu_custom_call.1} parent=1 // pred_check
      _
    $region7: #{tpu_custom_call.1} parent=1 // pred_check_branch
      %16 = sbr.rel (0) target = $region9
    $region8: #{tpu_custom_call.1} parent=1 // pred_region
      _
    $region9: #{tpu_custom_call.1} parent=1 // pred_fallthru
      _
    // Predicated region
    $region10: #{tpu_custom_call.1} parent=1 // pred_check
      _
    $region11: #{tpu_custom_call.1} parent=1 // pred_check_branch
      %18 = sbr.rel (0) target = $region13
    $region12: #{tpu_custom_call.1} parent=1 // pred_region
      _
    $region13: #{tpu_custom_call.1} parent=1 // pred_fallthru
      _
    // Predicated region
    $region14: #{tpu_custom_call.1} parent=1 // pred_check
      _
    $region15: #{tpu_custom_call.1} parent=1 // pred_check_branch
      %20 = sbr.rel (0) target = $region17
    $region16: #{tpu_custom_call.1} parent=1 // pred_region
      _
    $region17: #{tpu_custom_call.1} parent=1 // pred_fallthru
      _
    // Predicated region
    $region18: #{tpu_custom_call.1} parent=1 // pred_check
      _
    $region19: #{tpu_custom_call.1} parent=1 // pred_check_branch
      %22 = sbr.rel (0) target = $region21
    $region20: #{tpu_custom_call.1} parent=1 // pred_region
      _
    $region21: #{tpu_custom_call.1} parent=1 // pred_fallthru
      _
    // Predicated region
    $region22: #{tpu_custom_call.1} parent=1 // pred_check
      _
    $region23: #{tpu_custom_call.1} parent=1 // pred_check_branch
      %24 = sbr.rel (0) target = $region25
    $region24: #{tpu_custom_call.1} parent=1 // pred_region
      _
    $region25: #{tpu_custom_call.1} parent=1 // pred_fallthru
      _
    // Predicated region
    $region26: #{tpu_custom_call.1} parent=1 // pred_check
      _
    $region27: #{tpu_custom_call.1} parent=1 // pred_check_branch
      %26 = sbr.rel (0) target = $region29
    $region28: #{tpu_custom_call.1} parent=1 // pred_region
      _
    $region29: #{tpu_custom_call.1} parent=1 // pred_fallthru
      _
    %v27 = vld [vmem:[%s1] sm:$0xff]
    %v28 = vld [vmem:[%s1 + $0x8] sm:$0xff]
    %v29 = vld [vmem:[%s1 + $0x10] sm:$0xff]
    %v30 = vld [vmem:[%s1 + $0x18] sm:$0xff]
    %v31 = vld [vmem:[%s1 + $0x20] sm:$0xff]
    %v32 = vld [vmem:[%s1 + $0x28] sm:$0xff]
    %v33 = vld [vmem:[%s1 + $0x30] sm:$0xff]
    %v34 = vld [vmem:[%s1 + $0x38] sm:$0xff]
    %v35 = vld [vmem:[%s3] sm:$0xff]
    %v36 = vld [vmem:[%s3 + $0x8] sm:$0xff]
    %v37 = vld [vmem:[%s3 + $0x10] sm:$0xff]
    %v38 = vld [vmem:[%s3 + $0x18] sm:$0xff]
    %v39 = vld [vmem:[%s3 + $0x20] sm:$0xff]
    %v40 = vld [vmem:[%s3 + $0x28] sm:$0xff]
    %v41 = vld [vmem:[%s3 + $0x30] sm:$0xff]
    %v42 = vld [vmem:[%s3 + $0x38] sm:$0xff]
    %v43 = vld [vmem:[%s5] sm:$0x3]
    %v44 = vld [vmem:[%s2] sm:$0xff]
    %v45 = vld [vmem:[%s2 + $0x8] sm:$0xff]
    %v46 = vld [vmem:[%s2 + $0x10] sm:$0xff]
    %v47 = vld [vmem:[%s2 + $0x18] sm:$0xff]
    %v48 = vld [vmem:[%s2 + $0x20] sm:$0xff]
    %v49 = vld [vmem:[%s2 + $0x28] sm:$0xff]
    %v50 = vld [vmem:[%s2 + $0x30] sm:$0xff]
    %v51 = vld [vmem:[%s2 + $0x38] sm:$0xff]
    %53 = vset.pattern.permute.xlu0 0
    %54 = vperm.xlu0 %53, %v44
    %v55 = vpop.permute.xlu0 %54
    %58 = vset.pattern.permute.xlu0 0
    %59 = vperm.xlu0 %58, %v45
    %v60 = vpop.permute.xlu0 %59
    %63 = vset.pattern.permute.xlu0 0
    %64 = vperm.xlu0 %63, %v46
    %v65 = vpop.permute.xlu0 %64
    %68 = vset.pattern.permute.xlu0 0
    %69 = vperm.xlu0 %68, %v47
    %v70 = vpop.permute.xlu0 %69
    %73 = vset.pattern.permute.xlu0 0
    %74 = vperm.xlu0 %73, %v48
    %v75 = vpop.permute.xlu0 %74
    %78 = vset.pattern.permute.xlu0 0
    %79 = vperm.xlu0 %78, %v49
    %v80 = vpop.permute.xlu0 %79
    %83 = vset.pattern.permute.xlu0 0
    %84 = vperm.xlu0 %83, %v50
    %v85 = vpop.permute.xlu0 %84
    %88 = vset.pattern.permute.xlu0 0
    %89 = vperm.xlu0 %88, %v51
    %v90 = vpop.permute.xlu0 %89
    %v92 = vld [vmem:[%s4] sm:$0xff]
    %v93 = vld [vmem:[%s4 + $0x8] sm:$0xff]
    %v94 = vld [vmem:[%s4 + $0x10] sm:$0xff]
    %v95 = vld [vmem:[%s4 + $0x18] sm:$0xff]
    %v96 = vld [vmem:[%s4 + $0x20] sm:$0xff]
    %v97 = vld [vmem:[%s4 + $0x28] sm:$0xff]
    %v98 = vld [vmem:[%s4 + $0x30] sm:$0xff]
    %v99 = vld [vmem:[%s4 + $0x38] sm:$0xff]
    %101 = vset.pattern.permute.xlu0 0
    %102 = vperm.xlu0 %101, %v92
    %v103 = vpop.permute.xlu0 %102
    %106 = vset.pattern.permute.xlu0 0
    %107 = vperm.xlu0 %106, %v93
    %v108 = vpop.permute.xlu0 %107
    %111 = vset.pattern.permute.xlu0 0
    %112 = vperm.xlu0 %111, %v94
    %v113 = vpop.permute.xlu0 %112
    %116 = vset.pattern.permute.xlu0 0
    %117 = vperm.xlu0 %116, %v95
    %v118 = vpop.permute.xlu0 %117
    %121 = vset.pattern.permute.xlu0 0
    %122 = vperm.xlu0 %121, %v96
    %v123 = vpop.permute.xlu0 %122
    %126 = vset.pattern.permute.xlu0 0
    %127 = vperm.xlu0 %126, %v97
    %v128 = vpop.permute.xlu0 %127
    %131 = vset.pattern.permute.xlu0 0
    %132 = vperm.xlu0 %131, %v98
    %v133 = vpop.permute.xlu0 %132
    %136 = vset.pattern.permute.xlu0 0
    %137 = vperm.xlu0 %136, %v99
    %v138 = vpop.permute.xlu0 %137
    %v140 = vld [vmem:[%s6] sm:$0x3]
    %142 = vset.pattern.permute.xlu0 0
    %143 = vperm.xlu0 %142, %v140
    %v144 = vpop.permute.xlu0 %143
    %v146 = vld [vmem:[%s0] sm:$0xf]
    %vm147 = vcmask 31744
    %v149 = vsel %vm147, %v27, 0
    %v152 = vsel %vm147, %v28, 0
    %v155 = vsel %vm147, %v29, 0
    %v158 = vsel %vm147, %v30, 0
    %v161 = vsel %vm147, %v31, 0
    %v164 = vsel %vm147, %v32, 0
    %v167 = vsel %vm147, %v33, 0
    %v170 = vsel %vm147, %v34, 0
    %vm172 = vcmask 1043456
    %v174 = vsel %vm172, %v146, 0
    %176 = vmatpush.msra.mxu0 0.0
    %177 = vmatpush.msra.mxu0 0.0
    %178 = vmatpush.msra.mxu0 0.0
    %179 = vmatpush.msra.mxu0 0.0
    %180 = vmatpush.msra.mxu0 0.0
    %181 = vmatpush.msra.mxu0 0.0
    %182 = vmatpush.msra.mxu0 0.0
    %183 = vmatpush.msra.mxu0 0.0
    %184 = vmatpush.msra.mxu0 0.0
    %185 = vmatpush.msra.mxu0 0.0
    %186 = vmatpush.msra.mxu0 0.0
    %187 = vmatpush.msra.mxu0 0.0
    %188 = vmatpush.msra.mxu0 0.0
    %189 = vmatpush.msra.mxu0 0.0
    %190 = vmatpush.msra.mxu0 0.0
    %191 = vmatpush.msra.mxu0 %v174
    %192 = vmatmul.f32.gmra.mxu0 %v149
    %v193 = vpop.f32.mrf.mxu0
    %v194 = vadd.f32 %v55, %v193
    %195 = vmatmul.f32.gmra.mxu0 %v152
    %v196 = vpop.f32.mrf.mxu0
    %v197 = vadd.f32 %v60, %v196
    %198 = vmatmul.f32.gmra.mxu0 %v155
    %v199 = vpop.f32.mrf.mxu0
    %v200 = vadd.f32 %v65, %v199
    %201 = vmatmul.f32.gmra.mxu0 %v158
    %v202 = vpop.f32.mrf.mxu0
    %v203 = vadd.f32 %v70, %v202
    %204 = vmatmul.f32.gmra.mxu0 %v161
    %v205 = vpop.f32.mrf.mxu0
    %v206 = vadd.f32 %v75, %v205
    %207 = vmatmul.f32.gmra.mxu0 %v164
    %v208 = vpop.f32.mrf.mxu0
    %v209 = vadd.f32 %v80, %v208
    %210 = vmatmul.f32.gmra.mxu0 %v167
    %v211 = vpop.f32.mrf.mxu0
    %v212 = vadd.f32 %v85, %v211
    %213 = vmatmul.f32.gmra.mxu0 %v170
    %v214 = vpop.f32.mrf.mxu0
    %v215 = vadd.f32 %v90, %v214
    %216 = vdwg.mxu0
    %v217 = vmax.f32 %v194, 0.0
    %v218 = vmax.f32 %v197, 0.0
    %v219 = vmax.f32 %v200, 0.0
    %v220 = vmax.f32 %v203, 0.0
    %v221 = vmax.f32 %v206, 0.0
    %v222 = vmax.f32 %v209, 0.0
    %v223 = vmax.f32 %v212, 0.0
    %v224 = vmax.f32 %v215, 0.0
    %vm225 = vcmask 523264
    %v227 = vsel %vm225, %v35, 0
    %v230 = vsel %vm225, %v36, 0
    %v233 = vsel %vm225, %v37, 0
    %v236 = vsel %vm225, %v38, 0
    %v239 = vsel %vm225, %v39, 0
    %v242 = vsel %vm225, %v40, 0
    %v245 = vsel %vm225, %v41, 0
    %v248 = vsel %vm225, %v42, 0
    %250 = vmatpush.msra.mxu0 0.0
    %251 = vmatpush.msra.mxu0 0.0
    %252 = vmatpush.msra.mxu0 0.0
    %253 = vmatpush.msra.mxu0 0.0
    %254 = vmatpush.msra.mxu0 0.0
    %255 = vmatpush.msra.mxu0 0.0
    %256 = vmatpush.msra.mxu0 0.0
    %257 = vmatpush.msra.mxu0 0.0
    %258 = vmatpush.msra.mxu0 %v224
    %259 = vmatpush.msra.mxu0 %v223
    %260 = vmatpush.msra.mxu0 %v222
    %261 = vmatpush.msra.mxu0 %v221
    %262 = vmatpush.msra.mxu0 %v220
    %263 = vmatpush.msra.mxu0 %v219
    %264 = vmatpush.msra.mxu0 %v218
    %265 = vmatpush.msra.mxu0 %v217
    %266 = vmatmul.f32.gmra.mxu0 %v227
    %v267 = vpop.f32.mrf.mxu0
    %v268 = vadd.f32 %v103, %v267
    %269 = vmatmul.f32.gmra.mxu0 %v230
    %v270 = vpop.f32.mrf.mxu0
    %v271 = vadd.f32 %v108, %v270
    %272 = vmatmul.f32.gmra.mxu0 %v233
    %v273 = vpop.f32.mrf.mxu0
    %v274 = vadd.f32 %v113, %v273
    %275 = vmatmul.f32.gmra.mxu0 %v236
    %v276 = vpop.f32.mrf.mxu0
    %v277 = vadd.f32 %v118, %v276
    %278 = vmatmul.f32.gmra.mxu0 %v239
    %v279 = vpop.f32.mrf.mxu0
    %v280 = vadd.f32 %v123, %v279
    %281 = vmatmul.f32.gmra.mxu0 %v242
    %v282 = vpop.f32.mrf.mxu0
    %v283 = vadd.f32 %v128, %v282
    %284 = vmatmul.f32.gmra.mxu0 %v245
    %v285 = vpop.f32.mrf.mxu0
    %v286 = vadd.f32 %v133, %v285
    %287 = vmatmul.f32.gmra.mxu0 %v248
    %v288 = vpop.f32.mrf.mxu0
    %v289 = vadd.f32 %v138, %v288
    %290 = vdwg.mxu0
    %v291 = vmax.f32 %v268, 0.0
    %v292 = vmax.f32 %v271, 0.0
    %v293 = vmax.f32 %v274, 0.0
    %v294 = vmax.f32 %v277, 0.0
    %v295 = vmax.f32 %v280, 0.0
    %v296 = vmax.f32 %v283, 0.0
    %v297 = vmax.f32 %v286, 0.0
    %v298 = vmax.f32 %v289, 0.0
    %v300 = vsel %vm225, %v43, 0
    %302 = vmatpush.msra.mxu0 0.0
    %303 = vmatpush.msra.mxu0 0.0
    %304 = vmatpush.msra.mxu0 0.0
    %305 = vmatpush.msra.mxu0 0.0
    %306 = vmatpush.msra.mxu0 0.0
    %307 = vmatpush.msra.mxu0 0.0
    %308 = vmatpush.msra.mxu0 0.0
    %309 = vmatpush.msra.mxu0 0.0
    %310 = vmatpush.msra.mxu0 %v298
    %311 = vmatpush.msra.mxu0 %v297
    %312 = vmatpush.msra.mxu0 %v296
    %313 = vmatpush.msra.mxu0 %v295
    %314 = vmatpush.msra.mxu0 %v294
    %315 = vmatpush.msra.mxu0 %v293
    %316 = vmatpush.msra.mxu0 %v292
    %317 = vmatpush.msra.mxu0 %v291
    %318 = vmatmul.f32.gmra.mxu0 %v300
    %v319 = vpop.f32.mrf.mxu0
    %v320 = vadd.f32 %v144, %v319
    %321 = vdwg.mxu0
    %v323 = vrot.slane %v320, 1
    %v325 = vsub.f32 %v320, %v323
    %v326 = vsub.f32 0.0, %v325
    %v327 = vmul.f32 %v326, 1.442695
    %v328 = vpow.pop %v327
    %v329 = vadd.f32 %v328, 1.0
    %v330 = vrcp.pop %v329
    %v331 = vmul.f32 %v329, %v330
    %v332 = vsub.f32 1.0, %v331
    %v333 = vmul.f32 %v330, %v332
    %v334 = vadd.f32 %v330, %v333
    %vm335 = vweird.f32 %v329
    %vm336 = vweird.f32 %v330
    %vm337 = vmor %vm335, %vm336
    %v338 = vsel %vm337, %v330, %v334
    %v339 = vand.u32 2147483647, %v329
    %vm340 = vcmp.eq.f32.partialorder %v339, 8.507059e+37
    %v341 = vand.u32 %v329, 2147483648
    %v342 = vor.u32 1.1754944e-38, %v341
    %v343 = vsel %vm340, %v342, %v338
    %v344 = vsub.f32 1.0, %v343
    %v346 = vrot.slane %v344, 7
    %vm348 = vcmask 1040384
    %v349 = vsel %vm348, %v343, %v346
    %350 = vst [vmem:[#allocation2] sm:$0x3] %v349
    // Predicated region
    $region30: #{tpu_custom_call.1} parent=1 // pred_check
      _
    $region31: #{tpu_custom_call.1} parent=1 // pred_check_branch
      %352 = sbr.rel (0) target = $region33
    $region32: #{tpu_custom_call.1} parent=1 // pred_region
      %354 = vsyncadd [#allocation3], 0
      %s356 = sshll.u32 [#allocation2], 4
      %s357 = int_to_ptr.vmem [resolvable:$true] %s356
      %s358 = sshll.u32 %s7, 4
      %s359 = int_to_ptr.hbm [resolvable:$true] %s358
      %361 = dma.vmem_to_hbm [thread:$0]  %s357, 32, %s359, [#allocation3]
    $region33: #{tpu_custom_call.1} parent=1 // pred_fallthru
      _
    // Predicated region
    $region34: #{tpu_custom_call.1} parent=1 // pred_check
      _
    $region35: #{tpu_custom_call.1} parent=1 // pred_check_branch
      %363 = sbr.rel (0) target = $region37
    $region36: #{tpu_custom_call.1} parent=1 // pred_region
      %365 = dma.done [#allocation3], 32
    $region37: #{tpu_custom_call.1} parent=1 // pred_fallthru
      _
    %366 = vsyncpa [#allocation3], 1

</llo_original>
